<compile_context>
chip_gen: v7x
topology: tpu7x:2x2x1
jax: 0.10.0
libtpu: 0.0.40
codegen_flags: <defaults>
</compile_context>

<pallas_src>
import functools
import math
import warnings

import jax
import jax.numpy as jnp
from jax.experimental import pallas as pl
from jax.experimental.pallas import tpu as pltpu


def _round_up(x, m):
    return ((x + m - 1) // m) * m


def _cdiv(a, b):
    return -(-a // b)


# ---------------------------------------------------------------------------
# One-time (cached) self-check of pltpu.roll at the exact block shape used.
# ---------------------------------------------------------------------------
@functools.lru_cache(maxsize=None)
def _probe_roll(rows, cols):
    """Returns (d0, d1): d=+1 if pltpu.roll matches jnp.roll on that axis,
    -1 if reversed; None if it fails to lower / isn't a pure rotation (then
    the kernel falls back to jnp.roll)."""
    try:
        x = jnp.arange(rows * cols, dtype=jnp.float32).reshape(rows, cols)

        def probe_kernel(x_ref, r0s1, r1s1, r0sm, r1sm):
            v = x_ref[...]
            r0s1[...] = pltpu.roll(v, 1, 0)
            r1s1[...] = pltpu.roll(v, 1, 1)
            r0sm[...] = pltpu.roll(v, rows - 1, 0)
            r1sm[...] = pltpu.roll(v, cols - 1, 1)

        shp = jax.ShapeDtypeStruct((rows, cols), jnp.float32)
        vl = min(max(16 << 20, 10 * rows * _round_up(cols, 128) * 4 + (4 << 20)),
                 56 << 20)
        a0, a1, b0, b1 = pl.pallas_call(
            probe_kernel, out_shape=(shp, shp, shp, shp),
            compiler_params=pltpu.CompilerParams(vmem_limit_bytes=vl))(x)
        a0, a1, b0, b1 = jax.block_until_ready((a0, a1, b0, b1))

        def direction(got, axis):
            if bool(jnp.array_equal(got, jnp.roll(x, 1, axis))):
                return 1
            if bool(jnp.array_equal(got, jnp.roll(x, -1, axis))):
                return -1
            return 0

        d0, d1 = direction(a0, 0), direction(a1, 1)
        ok0 = d0 != 0 and bool(jnp.array_equal(b0, jnp.roll(x, -d0, 0)))
        ok1 = d1 != 0 and bool(jnp.array_equal(b1, jnp.roll(x, -d1, 1)))
        if not (ok0 and ok1):
            warnings.warn("pltpu.roll probe mismatch at (%d,%d); using jnp.roll"
                          % (rows, cols))
            return None
        return (d0, d1)
    except Exception as e:  # any lowering hiccup -> safe jnp.roll fallback
        warnings.warn("pltpu.roll unavailable at (%d,%d) (%s); using jnp.roll"
                      % (rows, cols, type(e).__name__))
        return None


def _roll_fns(roll_mode):
    """(prev, next) closures: prev(x, ax)[i] = x[i-1 mod n]; next(x, ax)[i] = x[i+1]."""
    if roll_mode is None:
        return (lambda x, ax: jnp.roll(x, 1, ax),
                lambda x, ax: jnp.roll(x, -1, ax))
    dirs = roll_mode

    def prev(x, ax):
        n = x.shape[ax]
        return pltpu.roll(x, 1 if dirs[ax] > 0 else n - 1, ax)

    def nxt(x, ax):
        n = x.shape[ax]
        return pltpu.roll(x, n - 1 if dirs[ax] > 0 else 1, ax)

    return prev, nxt


# ---------------------------------------------------------------------------
# Kernel bodies
# ---------------------------------------------------------------------------
def _sweep(x, a, b, *, n_iter, H, W, roll_mode):
    """n_iter Jacobi sweeps on a (tbg*H, S*W) lane-packed stack of slabs.
    Per-iteration update: x <- a * (vert + horz) + b, with a = 0.25 (or 0.25*G
    hoisted) and b = f (or G*f hoisted).  Everything stays VMEM/f32-resident."""
    R, L = x.shape
    prev, nxt = _roll_fns(roll_mode)

    # Narrow boundary masks (hoisted; broadcast inside the selects).
    row = jax.lax.broadcasted_iota(jnp.int32, (R, 1), 0) % H
    col = jax.lax.broadcasted_iota(jnp.int32, (1, L), 1) % W
    is_top, is_bot = row == 0, row == H - 1
    is_lft, is_rgt = col == 0, col == W - 1

    def body(_, xc):
        up = prev(xc, 0)   # up[r]    = x[r-1]   (wraps across slab rows; fixed below)
        dn = nxt(xc, 0)    # dn[r]    = x[r+1]
        lf = prev(xc, 1)   # lf[., c] = x[., c-1] (wraps across slab cols; fixed below)
        rt = nxt(xc, 1)    # rt[., c] = x[., c+1]
        # Reflect padding: the boundary neighbour duplicates the inward
        # neighbour.  The wrapped values only appear at slab-boundary
        # rows/cols, exactly where these selects overwrite them, so packing
        # slabs along both axes is safe.
        vert = jnp.where(is_top, dn, up) + jnp.where(is_bot, up, dn)
        horz = jnp.where(is_lft, rt, lf) + jnp.where(is_rgt, lf, rt)
        return a * (vert + horz) + b

    unroll = n_iter if n_iter <= 8 else 4
    return jax.lax.fori_loop(0, n_iter, body, x, unroll=unroll)


def _jacobi_kernel(layout_ref, heat_ref, out_ref, *, cof, n_iter, H, W, roll_mode):
    f = cof * layout_ref[...].astype(jnp.float32)
    x0 = heat_ref[...].astype(jnp.float32)
    y = _sweep(x0, 0.25, f, n_iter=n_iter, H=H, W=W, roll_mode=roll_mode)
    out_ref[...] = y.astype(out_ref.dtype)


def _jacobi_kernel_g(layout_ref, heat_ref, g_ref, out_ref, *, cof, n_iter, H, W,
                     roll_mode):
    g = g_ref[...].astype(jnp.float32)
    f = cof * layout_ref[...].astype(jnp.float32)
    x0 = heat_ref[...].astype(jnp.float32)
    g4 = 0.25 * g          # hoisted out of the sweep loop
    gf = g * f             # hoisted out of the sweep loop
    y = _sweep(x0, g4, gf, n_iter=n_iter, H=H, W=W, roll_mode=roll_mode)
    out_ref[...] = y.astype(out_ref.dtype)


# ---------------------------------------------------------------------------
# Planning helpers
# ---------------------------------------------------------------------------
def _make_G(H, W, nx, length, bcs, dtype):
    """Batch-invariant boundary mask (H, W); mirrors the PyTorch G construction."""
    G = jnp.ones((H, W), dtype=dtype)
    if bcs is None or len(bcs) == 0 or len(bcs[0]) == 0:
        return G
    for bc in bcs:
        if bc[0][1] == 0 and bc[1][1] == 0:
            s, e = round(bc[0][0] * nx / length), round(bc[1][0] * nx / length)
            G = G.at[s:e, :1].set(0.0)
        elif bc[0][1] == length and bc[1][1] == length:
            s, e = round(bc[0][0] * nx / length), round(bc[1][0] * nx / length)
            G = G.at[s:e, -1:].set(0.0)
        elif bc[0][0] == 0 and bc[1][0] == 0:
            s, e = round(bc[0][1] * nx / length), round(bc[1][1] * nx / length)
            G = G.at[:1, s:e].set(0.0)
        elif bc[0][0] == length and bc[1][0] == length:
            s, e = round(bc[0][1] * nx / length), round(bc[1][1] * nx / length)
            G = G.at[-1:, s:e].set(0.0)
        else:
            raise ValueError("bc error!")
    return G


def _choose_s(n_slabs, W):
    """Slabs packed side-by-side along the lane axis (lane density vs padding)."""
    if W >= 128:
        return 1
    best_s, best_score = 1, -1.0
    s_max = max(1, min(n_slabs, 512 // W))
    for s in range(1, s_max + 1):
        lanes = s * W
        density = lanes / _round_up(lanes, 128)
        pad_ratio = n_slabs / (_cdiv(n_slabs, s) * s)   # penalize slab padding
        score = density * pad_ratio
        if score > best_score + 1e-9:
            best_score, best_s = score, s
    return best_s


def _vmem_capacity_bytes():
    try:
        cap = getattr(pltpu.get_tpu_info(), "vmem_capacity_bytes", None)
        if cap:
            return int(cap)
    except Exception:
        pass
    return 64 << 20   # conservative default (v7x per-TensorCore VMEM)


def _plan_blocks(G, H, lw_phys, per_elem_bytes, budget):
    """Pick slab-rows per block (tbg) and the padded slab-row count (G_pad)."""
    unit = 8 // math.gcd(H, 8)       # minimal slab-rows so tbg*H % 8 == 0

    def need(rows):                  # physical VMEM bytes for one grid step
        return _round_up(rows, 8) * lw_phys * per_elem_bytes

    if G < 2 * unit or need(unit * H) > budget:
        # Too few slab-rows to tile cleanly, or even the minimal tile busts the
        # budget (giant slabs): one block over the full extent (block dims ==
        # array dims, so no (8,128) divisibility is required).
        return G, G

    tbg = unit
    while tbg + unit <= G and need((tbg + unit) * H) <= budget:
        tbg += unit
    G_pad = _round_up(G, tbg)

    # Prefer >= 2 grid steps (v7x: 2 TensorCores) when the extra padding is small.
    if G_pad // tbg < 2:
        cand = _round_up(_cdiv(G, 2), unit)
        if _round_up(G, cand) - G <= max(unit - 1, G // 8):
            tbg, G_pad = cand, _round_up(G, cand)
    return tbg, G_pad


# ---------------------------------------------------------------------------
# Wrapper
# ---------------------------------------------------------------------------
def jacobi_layer_soft(layout, heat, n_iter, *, nx=21, length=0.1, bcs=None):
    """Pallas equivalent of Jacobi_layerSoft(nx, length, bcs)(layout, heat, n_iter)."""
    assert n_iter >= 1
    assert layout.shape == heat.shape
    B, C, H, W = heat.shape
    assert H >= 2 and W >= 2
    dtype = heat.dtype
    itemsize = jnp.dtype(dtype).itemsize
    cof = 0.25 * (length / (nx - 1)) ** 2

    n_slabs = B * C
    S = _choose_s(n_slabs, W)          # slabs per lane-group
    G = _cdiv(n_slabs, S)              # slab-rows
    LW = S * W                         # logical lane width
    lw_phys = _round_up(LW, 128)       # physical lane width

    # Per-element VMEM cost: 3 double-buffered IO blocks in `dtype` plus ~8 f32
    # working arrays (x carry, f/Gf, G4, shifted neighbours & partial sums).
    per_elem = 2 * 3 * itemsize + 8 * 4
    cap = _vmem_capacity_bytes()
    tbg, G_pad = _plan_blocks(G, H, lw_phys, per_elem, int(cap * 0.55))
    RB = tbg * H                       # block rows
    n_steps = G_pad // tbg
    n_slab_pad = G_pad * S

    # ---- wrapper-side layout plumbing: (n_slabs,H,W) -> lane-packed (G_pad*H, S*W)
    lay = layout.astype(dtype).reshape(n_slabs, H, W)
    ht = heat.reshape(n_slabs, H, W)
    if n_slab_pad != n_slabs:
        pad = ((0, n_slab_pad - n_slabs), (0, 0), (0, 0))
        lay, ht = jnp.pad(lay, pad), jnp.pad(ht, pad)

    def pack(a):   # (G_pad*S, H, W) -> (G_pad*H, S*W); trivial when S == 1
        return a.reshape(G_pad, S, H, W).transpose(0, 2, 1, 3).reshape(G_pad * H, LW)

    lay2, ht2 = pack(lay), pack(ht)

    roll_mode = _probe_roll(RB, LW)
    slab_spec = pl.BlockSpec((RB, LW), lambda b: (b, 0))
    has_g = not (bcs is None or len(bcs) == 0 or len(bcs[0]) == 0)
    common = dict(cof=cof, n_iter=n_iter, H=H, W=W, roll_mode=roll_mode)

    if has_g:
        g_tile = jnp.tile(_make_G(H, W, nx, length, bcs, dtype), (tbg, S))
        kernel = functools.partial(_jacobi_kernel_g, **common)
        in_specs = [slab_spec, slab_spec,
                    pl.BlockSpec((RB, LW), lambda b: (0, 0))]   # batch-invariant
        args = (lay2, ht2, g_tile)
    else:
        kernel = functools.partial(_jacobi_kernel, **common)
        in_specs = [slab_spec, slab_spec]
        args = (lay2, ht2)

    need = _round_up(RB, 8) * lw_phys * per_elem
    if has_g:
        need += 2 * RB * lw_phys * itemsize
    vmem_limit = int(min(max(32 << 20, need + (8 << 20)), int(cap * 0.9)))

    out = pl.pallas_call(
        kernel,
        out_shape=jax.ShapeDtypeStruct((G_pad * H, LW), dtype),
        grid_spec=pltpu.PrefetchScalarGridSpec(
            num_scalar_prefetch=0,
            grid=(n_steps,),
            in_specs=in_specs,
            out_specs=slab_spec,
        ),
        compiler_params=pltpu.CompilerParams(
            dimension_semantics=("parallel",),
            vmem_limit_bytes=vmem_limit),
    )(*args)

    out = (out.reshape(G_pad, H, S, W).transpose(0, 2, 1, 3)
              .reshape(n_slab_pad, H, W)[:n_slabs])
    return out.reshape(B, C, H, W)


# ---------------------------------------------------------------------------
# Pure-JAX reference + self-test
# ---------------------------------------------------------------------------
def _reference(layout, heat, n_iter, *, nx, length, bcs=None):
    B, C, H, W = heat.shape
    cof = 0.25 * (length / (nx - 1)) ** 2
    f = cof * layout
    G = _make_G(H, W, nx, length, bcs, heat.dtype)[None, None]
    x = heat
    for _ in range(n_iter):
        p = jnp.pad(x, ((0, 0), (0, 0), (1, 1), (1, 1)), mode="reflect")
        conv = 0.25 * (p[:, :, :-2, 1:-1] + p[:, :, 1:-1, :-2]
                       + p[:, :, 1:-1, 2:] + p[:, :, 2:, 1:-1])
        x = G * (conv + f)
    return x


if __name__ == "__main__":
    key = jax.random.PRNGKey(0)
    length = 0.1

    # Case 1: bcs=None, even spatial size, several channels (fully lane-dense).
    B, C, nx, n_it = 2, 4, 16, 8
    k1, k2 = jax.random.split(key)
    layout = jax.random.uniform(k1, (B, C, nx, nx), dtype=jnp.float32) * 1000.0
    heat = jax.random.normal(k2, (B, C, nx, nx), dtype=jnp.float32)
    out = jacobi_layer_soft(layout, heat, n_it, nx=nx, length=length, bcs=None)
    out = jax.block_until_ready(out)
    ref = _reference(layout, heat, n_it, nx=nx, length=length, bcs=None)
    assert out.shape == (B, C, nx, nx)
    err = float(jnp.max(jnp.abs(out - ref)))
    assert jnp.allclose(out, ref, atol=1e-4, rtol=1e-4), err

    # Case 2: bcs path (Dirichlet segment on the left edge), odd nx=21 geometry.
    B2, C2, nx2, n_it2 = 2, 1, 21, 5
    k3, k4 = jax.random.split(k2)
    layout2 = jax.random.uniform(k3, (B2, C2, nx2, nx2), dtype=jnp.float32) * 1000.0
    heat2 = jax.random.normal(k4, (B2, C2, nx2, nx2), dtype=jnp.float32)
    bcs = [[[0.25 * length, 0.0], [0.75 * length, 0.0]]]
    out2 = jacobi_layer_soft(layout2, heat2, n_it2, nx=nx2, length=length, bcs=bcs)
    out2 = jax.block_until_ready(out2)
    ref2 = _reference(layout2, heat2, n_it2, nx=nx2, length=length, bcs=bcs)
    assert out2.shape == (B2, C2, nx2, nx2)
    err2 = float(jnp.max(jnp.abs(out2 - ref2)))
    assert jnp.allclose(out2, ref2, atol=1e-4, rtol=1e-4), err2

    print("KERNEL_OK")
</pallas_src>

<mosaic_0001>
module attributes {stable_mosaic.version = 11 : i64} {
  func.func @probe_kernel(%arg0: memref<16x128xf32, #tpu.memory_space<vmem>>, %arg1: memref<16x128xf32, #tpu.memory_space<vmem>>, %arg2: memref<16x128xf32, #tpu.memory_space<vmem>>, %arg3: memref<16x128xf32, #tpu.memory_space<vmem>>, %arg4: memref<16x128xf32, #tpu.memory_space<vmem>>) attributes {dimension_semantics = [], scalar_prefetch = 0 : i64, scratch_operands = 0 : i64, tpu.core_type = #tpu.core_type<tc>} {
    %c0 = arith.constant 0 : index
    %c0_0 = arith.constant 0 : index
    %0 = vector.load %arg0[%c0, %c0_0] : memref<16x128xf32, #tpu.memory_space<vmem>>, vector<16x128xf32>
    %c1_i32 = arith.constant 1 : i32
    %1 = tpu.dynamic_rotate %0 by %c1_i32 dim 0 : vector<16x128xf32>, i32 -> vector<16x128xf32>
    %c0_1 = arith.constant 0 : index
    %c0_2 = arith.constant 0 : index
    %2 = vector.load %arg1[%c0_1, %c0_2] : memref<16x128xf32, #tpu.memory_space<vmem>>, vector<16x128xf32>
    tpu.vector_store %arg1[%c0_1, %c0_2], %1 {strides = array<i32>} : memref<16x128xf32, #tpu.memory_space<vmem>>, vector<16x128xf32>,
    %c1_i32_3 = arith.constant 1 : i32
    %3 = tpu.dynamic_rotate %0 by %c1_i32_3 dim 1 : vector<16x128xf32>, i32 -> vector<16x128xf32>
    %c0_4 = arith.constant 0 : index
    %c0_5 = arith.constant 0 : index
    %4 = vector.load %arg2[%c0_4, %c0_5] : memref<16x128xf32, #tpu.memory_space<vmem>>, vector<16x128xf32>
    tpu.vector_store %arg2[%c0_4, %c0_5], %3 {strides = array<i32>} : memref<16x128xf32, #tpu.memory_space<vmem>>, vector<16x128xf32>,
    %c15_i32 = arith.constant 15 : i32
    %5 = tpu.dynamic_rotate %0 by %c15_i32 dim 0 : vector<16x128xf32>, i32 -> vector<16x128xf32>
    %c0_6 = arith.constant 0 : index
    %c0_7 = arith.constant 0 : index
    %6 = vector.load %arg3[%c0_6, %c0_7] : memref<16x128xf32, #tpu.memory_space<vmem>>, vector<16x128xf32>
    tpu.vector_store %arg3[%c0_6, %c0_7], %5 {strides = array<i32>} : memref<16x128xf32, #tpu.memory_space<vmem>>, vector<16x128xf32>,
    %c127_i32 = arith.constant 127 : i32
    %7 = tpu.dynamic_rotate %0 by %c127_i32 dim 1 : vector<16x128xf32>, i32 -> vector<16x128xf32>
    %c0_8 = arith.constant 0 : index
    %c0_9 = arith.constant 0 : index
    %8 = vector.load %arg4[%c0_8, %c0_9] : memref<16x128xf32, #tpu.memory_space<vmem>>, vector<16x128xf32>
    tpu.vector_store %arg4[%c0_8, %c0_9], %7 {strides = array<i32>} : memref<16x128xf32, #tpu.memory_space<vmem>>, vector<16x128xf32>,
    return
  }
}

module attributes {stable_mosaic.version = 11 : i64} {
  func.func @_jacobi_kernel(%arg0: i32, %arg1: memref<16x128xf32, #tpu.memory_space<vmem>>, %arg2: memref<16x128xf32, #tpu.memory_space<vmem>>, %arg3: memref<16x128xf32, #tpu.memory_space<vmem>>) attributes {dimension_semantics = [#tpu.dimension_semantics<parallel>], iteration_bounds = array<i64: 1>, scalar_prefetch = 0 : i64, scratch_operands = 0 : i64, tpu.core_type = #tpu.core_type<tc>, window_params = [{transform_indices = @transform_0, window_bounds = array<i64: 16, 128>}, {transform_indices = @transform_1, window_bounds = array<i64: 16, 128>}, {transform_indices = @transform_2, window_bounds = array<i64: 16, 128>}]} {
    %c0 = arith.constant 0 : index
    %c0_0 = arith.constant 0 : index
    %0 = vector.load %arg1[%c0, %c0_0] : memref<16x128xf32, #tpu.memory_space<vmem>>, vector<16x128xf32>
    %cst = arith.constant 1.11111112E-5 : f32
    %1 = vector.broadcast %cst : f32 to vector<16x128xf32>
    %2 = arith.mulf %1, %0 : vector<16x128xf32>
    %c0_1 = arith.constant 0 : index
    %c0_2 = arith.constant 0 : index
    %3 = vector.load %arg2[%c0_1, %c0_2] : memref<16x128xf32, #tpu.memory_space<vmem>>, vector<16x128xf32>
    %4 = tpu.iota {dimensions = array<i32: 0>} : vector<16x1xi32>
    %c16_i32 = arith.constant 16 : i32
    %c0_i32 = arith.constant 0 : i32
    %5 = arith.cmpi eq, %c16_i32, %c0_i32 : i32
    %c1_i32 = arith.constant 1 : i32
    %6 = arith.select %5, %c1_i32, %c16_i32 : i32
    %7 = vector.broadcast %6 : i32 to vector<16x1xi32>
    %8 = arith.remsi %4, %7 : vector<16x1xi32>
    %c0_i32_3 = arith.constant 0 : i32
    %9 = vector.broadcast %c0_i32_3 : i32 to vector<16x1xi32>
    %10 = arith.cmpi ne, %8, %9 : vector<16x1xi32>
    %c0_i32_4 = arith.constant 0 : i32
    %11 = vector.broadcast %c0_i32_4 : i32 to vector<16x1xi32>
    %12 = arith.cmpi slt, %8, %11 : vector<16x1xi32>
    %c0_i32_5 = arith.constant 0 : i32
    %13 = arith.cmpi slt, %6, %c0_i32_5 : i32
    %14 = vector.broadcast %13 : i1 to vector<16x1xi1>
    %15 = vector.broadcast %14 : vector<16x1xi1> to vector<16x1xi1>
    %16 = arith.xori %12, %15 : vector<16x1xi1>
    %17 = arith.andi %16, %10 : vector<16x1xi1>
    %18 = vector.broadcast %6 : i32 to vector<16x1xi32>
    %19 = arith.addi %8, %18 : vector<16x1xi32>
    %20 = arith.select %17, %19, %8 : vector<16x1xi1>, vector<16x1xi32>
    %21 = tpu.iota {dimensions = array<i32: 1>} : vector<1x128xi32>
    %c16_i32_6 = arith.constant 16 : i32
    %c0_i32_7 = arith.constant 0 : i32
    %22 = arith.cmpi eq, %c16_i32_6, %c0_i32_7 : i32
    %c1_i32_8 = arith.constant 1 : i32
    %23 = arith.select %22, %c1_i32_8, %c16_i32_6 : i32
    %24 = vector.broadcast %23 : i32 to vector<1x128xi32>
    %25 = arith.remsi %21, %24 : vector<1x128xi32>
    %c0_i32_9 = arith.constant 0 : i32
    %26 = vector.broadcast %c0_i32_9 : i32 to vector<1x128xi32>
    %27 = arith.cmpi ne, %25, %26 : vector<1x128xi32>
    %c0_i32_10 = arith.constant 0 : i32
    %28 = vector.broadcast %c0_i32_10 : i32 to vector<1x128xi32>
    %29 = arith.cmpi slt, %25, %28 : vector<1x128xi32>
    %c0_i32_11 = arith.constant 0 : i32
    %30 = arith.cmpi slt, %23, %c0_i32_11 : i32
    %31 = vector.broadcast %30 : i1 to vector<1x128xi1>
    %32 = vector.broadcast %31 : vector<1x128xi1> to vector<1x128xi1>
    %33 = arith.xori %29, %32 : vector<1x128xi1>
    %34 = arith.andi %33, %27 : vector<1x128xi1>
    %35 = vector.broadcast %23 : i32 to vector<1x128xi32>
    %36 = arith.addi %25, %35 : vector<1x128xi32>
    %37 = arith.select %34, %36, %25 : vector<1x128xi1>, vector<1x128xi32>
    %c0_i32_12 = arith.constant 0 : i32
    %38 = vector.broadcast %c0_i32_12 : i32 to vector<16x1xi32>
    %39 = arith.cmpi eq, %20, %38 : vector<16x1xi32>
    %c15_i32 = arith.constant 15 : i32
    %40 = vector.broadcast %c15_i32 : i32 to vector<16x1xi32>
    %41 = arith.cmpi eq, %20, %40 : vector<16x1xi32>
    %c0_i32_13 = arith.constant 0 : i32
    %42 = vector.broadcast %c0_i32_13 : i32 to vector<1x128xi32>
    %43 = arith.cmpi eq, %37, %42 : vector<1x128xi32>
    %c15_i32_14 = arith.constant 15 : i32
    %44 = vector.broadcast %c15_i32_14 : i32 to vector<1x128xi32>
    %45 = arith.cmpi eq, %37, %44 : vector<1x128xi32>
    %c0_i32_15 = arith.constant 0 : i32
    %46 = vector.extract_strided_slice %3 {offsets = [15, 0], sizes = [1, 128], strides = [1, 1]} : vector<16x128xf32> to vector<1x128xf32>
    %47 = vector.extract_strided_slice %3 {offsets = [0, 0], sizes = [15, 128], strides = [1, 1]} : vector<16x128xf32> to vector<15x128xf32>
    %48 = tpu.concatenate %46, %47 in 0 : vector<1x128xf32>, vector<15x128xf32> -> vector<16x128xf32>
    %49 = vector.extract_strided_slice %3 {offsets = [1, 0], sizes = [15, 128], strides = [1, 1]} : vector<16x128xf32> to vector<15x128xf32>
    %50 = vector.extract_strided_slice %3 {offsets = [0, 0], sizes = [1, 128], strides = [1, 1]} : vector<16x128xf32> to vector<1x128xf32>
    %51 = tpu.concatenate %49, %50 in 0 : vector<15x128xf32>, vector<1x128xf32> -> vector<16x128xf32>
    %52 = vector.extract_strided_slice %3 {offsets = [0, 127], sizes = [16, 1], strides = [1, 1]} : vector<16x128xf32> to vector<16x1xf32>
    %53 = vector.extract_strided_slice %3 {offsets = [0, 0], sizes = [16, 127], strides = [1, 1]} : vector<16x128xf32> to vector<16x127xf32>
    %54 = tpu.concatenate %52, %53 in 1 : vector<16x1xf32>, vector<16x127xf32> -> vector<16x128xf32>
    %55 = vector.extract_strided_slice %3 {offsets = [0, 1], sizes = [16, 127], strides = [1, 1]} : vector<16x128xf32> to vector<16x127xf32>
    %56 = vector.extract_strided_slice %3 {offsets = [0, 0], sizes = [16, 1], strides = [1, 1]} : vector<16x128xf32> to vector<16x1xf32>
    %57 = tpu.concatenate %55, %56 in 1 : vector<16x127xf32>, vector<16x1xf32> -> vector<16x128xf32>
    %58 = vector.shape_cast %39 : vector<16x1xi1> to vector<16x1xi1>
    %59 = vector.broadcast %58 : vector<16x1xi1> to vector<16x128xi1>
    %60 = arith.select %59, %51, %48 : vector<16x128xi1>, vector<16x128xf32>
    %61 = vector.shape_cast %41 : vector<16x1xi1> to vector<16x1xi1>
    %62 = vector.broadcast %61 : vector<16x1xi1> to vector<16x128xi1>
    %63 = arith.select %62, %48, %51 : vector<16x128xi1>, vector<16x128xf32>
    %64 = arith.addf %60, %63 : vector<16x128xf32>
    %65 = vector.shape_cast %43 : vector<1x128xi1> to vector<1x128xi1>
    %66 = vector.broadcast %65 : vector<1x128xi1> to vector<16x128xi1>
    %67 = arith.select %66, %57, %54 : vector<16x128xi1>, vector<16x128xf32>
    %68 = vector.shape_cast %45 : vector<1x128xi1> to vector<1x128xi1>
    %69 = vector.broadcast %68 : vector<1x128xi1> to vector<16x128xi1>
    %70 = arith.select %69, %54, %57 : vector<16x128xi1>, vector<16x128xf32>
    %71 = arith.addf %67, %70 : vector<16x128xf32>
    %72 = arith.addf %64, %71 : vector<16x128xf32>
    %cst_16 = arith.constant 2.500000e-01 : f32
    %73 = vector.broadcast %cst_16 : f32 to vector<16x128xf32>
    %74 = arith.mulf %73, %72 : vector<16x128xf32>
    %75 = arith.addf %74, %2 : vector<16x128xf32>
    %c1_i32_17 = arith.constant 1 : i32
    %76 = vector.extract_strided_slice %75 {offsets = [15, 0], sizes = [1, 128], strides = [1, 1]} : vector<16x128xf32> to vector<1x128xf32>
    %77 = vector.extract_strided_slice %75 {offsets = [0, 0], sizes = [15, 128], strides = [1, 1]} : vector<16x128xf32> to vector<15x128xf32>
    %78 = tpu.concatenate %76, %77 in 0 : vector<1x128xf32>, vector<15x128xf32> -> vector<16x128xf32>
    %79 = vector.extract_strided_slice %75 {offsets = [1, 0], sizes = [15, 128], strides = [1, 1]} : vector<16x128xf32> to vector<15x128xf32>
    %80 = vector.extract_strided_slice %75 {offsets = [0, 0], sizes = [1, 128], strides = [1, 1]} : vector<16x128xf32> to vector<1x128xf32>
    %81 = tpu.concatenate %79, %80 in 0 : vector<15x128xf32>, vector<1x128xf32> -> vector<16x128xf32>
    %82 = vector.extract_strided_slice %75 {offsets = [0, 127], sizes = [16, 1], strides = [1, 1]} : vector<16x128xf32> to vector<16x1xf32>
    %83 = vector.extract_strided_slice %75 {offsets = [0, 0], sizes = [16, 127], strides = [1, 1]} : vector<16x128xf32> to vector<16x127xf32>
    %84 = tpu.concatenate %82, %83 in 1 : vector<16x1xf32>, vector<16x127xf32> -> vector<16x128xf32>
    %85 = vector.extract_strided_slice %75 {offsets = [0, 1], sizes = [16, 127], strides = [1, 1]} : vector<16x128xf32> to vector<16x127xf32>
    %86 = vector.extract_strided_slice %75 {offsets = [0, 0], sizes = [16, 1], strides = [1, 1]} : vector<16x128xf32> to vector<16x1xf32>
    %87 = tpu.concatenate %85, %86 in 1 : vector<16x127xf32>, vector<16x1xf32> -> vector<16x128xf32>
    %88 = vector.shape_cast %39 : vector<16x1xi1> to vector<16x1xi1>
    %89 = vector.broadcast %88 : vector<16x1xi1> to vector<16x128xi1>
    %90 = arith.select %89, %81, %78 : vector<16x128xi1>, vector<16x128xf32>
    %91 = vector.shape_cast %41 : vector<16x1xi1> to vector<16x1xi1>
    %92 = vector.broadcast %91 : vector<16x1xi1> to vector<16x128xi1>
    %93 = arith.select %92, %78, %81 : vector<16x128xi1>, vector<16x128xf32>
    %94 = arith.addf %90, %93 : vector<16x128xf32>
    %95 = vector.shape_cast %43 : vector<1x128xi1> to vector<1x128xi1>
    %96 = vector.broadcast %95 : vector<1x128xi1> to vector<16x128xi1>
    %97 = arith.select %96, %87, %84 : vector<16x128xi1>, vector<16x128xf32>
    %98 = vector.shape_cast %45 : vector<1x128xi1> to vector<1x128xi1>
    %99 = vector.broadcast %98 : vector<1x128xi1> to vector<16x128xi1>
    %100 = arith.select %99, %84, %87 : vector<16x128xi1>, vector<16x128xf32>
    %101 = arith.addf %97, %100 : vector<16x128xf32>
    %102 = arith.addf %94, %101 : vector<16x128xf32>
    %cst_18 = arith.constant 2.500000e-01 : f32
    %103 = vector.broadcast %cst_18 : f32 to vector<16x128xf32>
    %104 = arith.mulf %103, %102 : vector<16x128xf32>
    %105 = arith.addf %104, %2 : vector<16x128xf32>
    %c2_i32 = arith.constant 2 : i32
    %106 = vector.extract_strided_slice %105 {offsets = [15, 0], sizes = [1, 128], strides = [1, 1]} : vector<16x128xf32> to vector<1x128xf32>
    %107 = vector.extract_strided_slice %105 {offsets = [0, 0], sizes = [15, 128], strides = [1, 1]} : vector<16x128xf32> to vector<15x128xf32>
    %108 = tpu.concatenate %106, %107 in 0 : vector<1x128xf32>, vector<15x128xf32> -> vector<16x128xf32>
    %109 = vector.extract_strided_slice %105 {offsets = [1, 0], sizes = [15, 128], strides = [1, 1]} : vector<16x128xf32> to vector<15x128xf32>
    %110 = vector.extract_strided_slice %105 {offsets = [0, 0], sizes = [1, 128], strides = [1, 1]} : vector<16x128xf32> to vector<1x128xf32>
    %111 = tpu.concatenate %109, %110 in 0 : vector<15x128xf32>, vector<1x128xf32> -> vector<16x128xf32>
    %112 = vector.extract_strided_slice %105 {offsets = [0, 127], sizes = [16, 1], strides = [1, 1]} : vector<16x128xf32> to vector<16x1xf32>
    %113 = vector.extract_strided_slice %105 {offsets = [0, 0], sizes = [16, 127], strides = [1, 1]} : vector<16x128xf32> to vector<16x127xf32>
    %114 = tpu.concatenate %112, %113 in 1 : vector<16x1xf32>, vector<16x127xf32> -> vector<16x128xf32>
    %115 = vector.extract_strided_slice %105 {offsets = [0, 1], sizes = [16, 127], strides = [1, 1]} : vector<16x128xf32> to vector<16x127xf32>
    %116 = vector.extract_strided_slice %105 {offsets = [0, 0], sizes = [16, 1], strides = [1, 1]} : vector<16x128xf32> to vector<16x1xf32>
    %117 = tpu.concatenate %115, %116 in 1 : vector<16x127xf32>, vector<16x1xf32> -> vector<16x128xf32>
    %118 = vector.shape_cast %39 : vector<16x1xi1> to vector<16x1xi1>
    %119 = vector.broadcast %118 : vector<16x1xi1> to vector<16x128xi1>
    %120 = arith.select %119, %111, %108 : vector<16x128xi1>, vector<16x128xf32>
    %121 = vector.shape_cast %41 : vector<16x1xi1> to vector<16x1xi1>
    %122 = vector.broadcast %121 : vector<16x1xi1> to vector<16x128xi1>
    %123 = arith.select %122, %108, %111 : vector<16x128xi1>, vector<16x128xf32>
    %124 = arith.addf %120, %123 : vector<16x128xf32>
    %125 = vector.shape_cast %43 : vector<1x128xi1> to vector<1x128xi1>
    %126 = vector.broadcast %125 : vector<1x128xi1> to vector<16x128xi1>
    %127 = arith.select %126, %117, %114 : vector<16x128xi1>, vector<16x128xf32>
    %128 = vector.shape_cast %45 : vector<1x128xi1> to vector<1x128xi1>
    %129 = vector.broadcast %128 : vector<1x128xi1> to vector<16x128xi1>
    %130 = arith.select %129, %114, %117 : vector<16x128xi1>, vector<16x128xf32>
    %131 = arith.addf %127, %130 : vector<16x128xf32>
    %132 = arith.addf %124, %131 : vector<16x128xf32>
    %cst_19 = arith.constant 2.500000e-01 : f32
    %133 = vector.broadcast %cst_19 : f32 to vector<16x128xf32>
    %134 = arith.mulf %133, %132 : vector<16x128xf32>
    %135 = arith.addf %134, %2 : vector<16x128xf32>
    %c3_i32 = arith.constant 3 : i32
    %136 = vector.extract_strided_slice %135 {offsets = [15, 0], sizes = [1, 128], strides = [1, 1]} : vector<16x128xf32> to vector<1x128xf32>
    %137 = vector.extract_strided_slice %135 {offsets = [0, 0], sizes = [15, 128], strides = [1, 1]} : vector<16x128xf32> to vector<15x128xf32>
    %138 = tpu.concatenate %136, %137 in 0 : vector<1x128xf32>, vector<15x128xf32> -> vector<16x128xf32>
    %139 = vector.extract_strided_slice %135 {offsets = [1, 0], sizes = [15, 128], strides = [1, 1]} : vector<16x128xf32> to vector<15x128xf32>
    %140 = vector.extract_strided_slice %135 {offsets = [0, 0], sizes = [1, 128], strides = [1, 1]} : vector<16x128xf32> to vector<1x128xf32>
    %141 = tpu.concatenate %139, %140 in 0 : vector<15x128xf32>, vector<1x128xf32> -> vector<16x128xf32>
    %142 = vector.extract_strided_slice %135 {offsets = [0, 127], sizes = [16, 1], strides = [1, 1]} : vector<16x128xf32> to vector<16x1xf32>
    %143 = vector.extract_strided_slice %135 {offsets = [0, 0], sizes = [16, 127], strides = [1, 1]} : vector<16x128xf32> to vector<16x127xf32>
    %144 = tpu.concatenate %142, %143 in 1 : vector<16x1xf32>, vector<16x127xf32> -> vector<16x128xf32>
    %145 = vector.extract_strided_slice %135 {offsets = [0, 1], sizes = [16, 127], strides = [1, 1]} : vector<16x128xf32> to vector<16x127xf32>
    %146 = vector.extract_strided_slice %135 {offsets = [0, 0], sizes = [16, 1], strides = [1, 1]} : vector<16x128xf32> to vector<16x1xf32>
    %147 = tpu.concatenate %145, %146 in 1 : vector<16x127xf32>, vector<16x1xf32> -> vector<16x128xf32>
    %148 = vector.shape_cast %39 : vector<16x1xi1> to vector<16x1xi1>
    %149 = vector.broadcast %148 : vector<16x1xi1> to vector<16x128xi1>
    %150 = arith.select %149, %141, %138 : vector<16x128xi1>, vector<16x128xf32>
    %151 = vector.shape_cast %41 : vector<16x1xi1> to vector<16x1xi1>
    %152 = vector.broadcast %151 : vector<16x1xi1> to vector<16x128xi1>
    %153 = arith.select %152, %138, %141 : vector<16x128xi1>, vector<16x128xf32>
    %154 = arith.addf %150, %153 : vector<16x128xf32>
    %155 = vector.shape_cast %43 : vector<1x128xi1> to vector<1x128xi1>
    %156 = vector.broadcast %155 : vector<1x128xi1> to vector<16x128xi1>
    %157 = arith.select %156, %147, %144 : vector<16x128xi1>, vector<16x128xf32>
    %158 = vector.shape_cast %45 : vector<1x128xi1> to vector<1x128xi1>
    %159 = vector.broadcast %158 : vector<1x128xi1> to vector<16x128xi1>
    %160 = arith.select %159, %144, %147 : vector<16x128xi1>, vector<16x128xf32>
    %161 = arith.addf %157, %160 : vector<16x128xf32>
    %162 = arith.addf %154, %161 : vector<16x128xf32>
    %cst_20 = arith.constant 2.500000e-01 : f32
    %163 = vector.broadcast %cst_20 : f32 to vector<16x128xf32>
    %164 = arith.mulf %163, %162 : vector<16x128xf32>
    %165 = arith.addf %164, %2 : vector<16x128xf32>
    %c4_i32 = arith.constant 4 : i32
    %166 = vector.extract_strided_slice %165 {offsets = [15, 0], sizes = [1, 128], strides = [1, 1]} : vector<16x128xf32> to vector<1x128xf32>
    %167 = vector.extract_strided_slice %165 {offsets = [0, 0], sizes = [15, 128], strides = [1, 1]} : vector<16x128xf32> to vector<15x128xf32>
    %168 = tpu.concatenate %166, %167 in 0 : vector<1x128xf32>, vector<15x128xf32> -> vector<16x128xf32>
    %169 = vector.extract_strided_slice %165 {offsets = [1, 0], sizes = [15, 128], strides = [1, 1]} : vector<16x128xf32> to vector<15x128xf32>
    %170 = vector.extract_strided_slice %165 {offsets = [0, 0], sizes = [1, 128], strides = [1, 1]} : vector<16x128xf32> to vector<1x128xf32>
    %171 = tpu.concatenate %169, %170 in 0 : vector<15x128xf32>, vector<1x128xf32> -> vector<16x128xf32>
    %172 = vector.extract_strided_slice %165 {offsets = [0, 127], sizes = [16, 1], strides = [1, 1]} : vector<16x128xf32> to vector<16x1xf32>
    %173 = vector.extract_strided_slice %165 {offsets = [0, 0], sizes = [16, 127], strides = [1, 1]} : vector<16x128xf32> to vector<16x127xf32>
    %174 = tpu.concatenate %172, %173 in 1 : vector<16x1xf32>, vector<16x127xf32> -> vector<16x128xf32>
    %175 = vector.extract_strided_slice %165 {offsets = [0, 1], sizes = [16, 127], strides = [1, 1]} : vector<16x128xf32> to vector<16x127xf32>
    %176 = vector.extract_strided_slice %165 {offsets = [0, 0], sizes = [16, 1], strides = [1, 1]} : vector<16x128xf32> to vector<16x1xf32>
    %177 = tpu.concatenate %175, %176 in 1 : vector<16x127xf32>, vector<16x1xf32> -> vector<16x128xf32>
    %178 = vector.shape_cast %39 : vector<16x1xi1> to vector<16x1xi1>
    %179 = vector.broadcast %178 : vector<16x1xi1> to vector<16x128xi1>
    %180 = arith.select %179, %171, %168 : vector<16x128xi1>, vector<16x128xf32>
    %181 = vector.shape_cast %41 : vector<16x1xi1> to vector<16x1xi1>
    %182 = vector.broadcast %181 : vector<16x1xi1> to vector<16x128xi1>
    %183 = arith.select %182, %168, %171 : vector<16x128xi1>, vector<16x128xf32>
    %184 = arith.addf %180, %183 : vector<16x128xf32>
    %185 = vector.shape_cast %43 : vector<1x128xi1> to vector<1x128xi1>
    %186 = vector.broadcast %185 : vector<1x128xi1> to vector<16x128xi1>
    %187 = arith.select %186, %177, %174 : vector<16x128xi1>, vector<16x128xf32>
    %188 = vector.shape_cast %45 : vector<1x128xi1> to vector<1x128xi1>
    %189 = vector.broadcast %188 : vector<1x128xi1> to vector<16x128xi1>
    %190 = arith.select %189, %174, %177 : vector<16x128xi1>, vector<16x128xf32>
    %191 = arith.addf %187, %190 : vector<16x128xf32>
    %192 = arith.addf %184, %191 : vector<16x128xf32>
    %cst_21 = arith.constant 2.500000e-01 : f32
    %193 = vector.broadcast %cst_21 : f32 to vector<16x128xf32>
    %194 = arith.mulf %193, %192 : vector<16x128xf32>
    %195 = arith.addf %194, %2 : vector<16x128xf32>
    %c5_i32 = arith.constant 5 : i32
    %196 = vector.extract_strided_slice %195 {offsets = [15, 0], sizes = [1, 128], strides = [1, 1]} : vector<16x128xf32> to vector<1x128xf32>
    %197 = vector.extract_strided_slice %195 {offsets = [0, 0], sizes = [15, 128], strides = [1, 1]} : vector<16x128xf32> to vector<15x128xf32>
    %198 = tpu.concatenate %196, %197 in 0 : vector<1x128xf32>, vector<15x128xf32> -> vector<16x128xf32>
    %199 = vector.extract_strided_slice %195 {offsets = [1, 0], sizes = [15, 128], strides = [1, 1]} : vector<16x128xf32> to vector<15x128xf32>
    %200 = vector.extract_strided_slice %195 {offsets = [0, 0], sizes = [1, 128], strides = [1, 1]} : vector<16x128xf32> to vector<1x128xf32>
    %201 = tpu.concatenate %199, %200 in 0 : vector<15x128xf32>, vector<1x128xf32> -> vector<16x128xf32>
    %202 = vector.extract_strided_slice %195 {offsets = [0, 127], sizes = [16, 1], strides = [1, 1]} : vector<16x128xf32> to vector<16x1xf32>
    %203 = vector.extract_strided_slice %195 {offsets = [0, 0], sizes = [16, 127], strides = [1, 1]} : vector<16x128xf32> to vector<16x127xf32>
    %204 = tpu.concatenate %202, %203 in 1 : vector<16x1xf32>, vector<16x127xf32> -> vector<16x128xf32>
    %205 = vector.extract_strided_slice %195 {offsets = [0, 1], sizes = [16, 127], strides = [1, 1]} : vector<16x128xf32> to vector<16x127xf32>
    %206 = vector.extract_strided_slice %195 {offsets = [0, 0], sizes = [16, 1], strides = [1, 1]} : vector<16x128xf32> to vector<16x1xf32>
    %207 = tpu.concatenate %205, %206 in 1 : vector<16x127xf32>, vector<16x1xf32> -> vector<16x128xf32>
    %208 = vector.shape_cast %39 : vector<16x1xi1> to vector<16x1xi1>
    %209 = vector.broadcast %208 : vector<16x1xi1> to vector<16x128xi1>
    %210 = arith.select %209, %201, %198 : vector<16x128xi1>, vector<16x128xf32>
    %211 = vector.shape_cast %41 : vector<16x1xi1> to vector<16x1xi1>
    %212 = vector.broadcast %211 : vector<16x1xi1> to vector<16x128xi1>
    %213 = arith.select %212, %198, %201 : vector<16x128xi1>, vector<16x128xf32>
    %214 = arith.addf %210, %213 : vector<16x128xf32>
    %215 = vector.shape_cast %43 : vector<1x128xi1> to vector<1x128xi1>
    %216 = vector.broadcast %215 : vector<1x128xi1> to vector<16x128xi1>
    %217 = arith.select %216, %207, %204 : vector<16x128xi1>, vector<16x128xf32>
    %218 = vector.shape_cast %45 : vector<1x128xi1> to vector<1x128xi1>
    %219 = vector.broadcast %218 : vector<1x128xi1> to vector<16x128xi1>
    %220 = arith.select %219, %204, %207 : vector<16x128xi1>, vector<16x128xf32>
    %221 = arith.addf %217, %220 : vector<16x128xf32>
    %222 = arith.addf %214, %221 : vector<16x128xf32>
    %cst_22 = arith.constant 2.500000e-01 : f32
    %223 = vector.broadcast %cst_22 : f32 to vector<16x128xf32>
    %224 = arith.mulf %223, %222 : vector<16x128xf32>
    %225 = arith.addf %224, %2 : vector<16x128xf32>
    %c6_i32 = arith.constant 6 : i32
    %226 = vector.extract_strided_slice %225 {offsets = [15, 0], sizes = [1, 128], strides = [1, 1]} : vector<16x128xf32> to vector<1x128xf32>
    %227 = vector.extract_strided_slice %225 {offsets = [0, 0], sizes = [15, 128], strides = [1, 1]} : vector<16x128xf32> to vector<15x128xf32>
    %228 = tpu.concatenate %226, %227 in 0 : vector<1x128xf32>, vector<15x128xf32> -> vector<16x128xf32>
    %229 = vector.extract_strided_slice %225 {offsets = [1, 0], sizes = [15, 128], strides = [1, 1]} : vector<16x128xf32> to vector<15x128xf32>
    %230 = vector.extract_strided_slice %225 {offsets = [0, 0], sizes = [1, 128], strides = [1, 1]} : vector<16x128xf32> to vector<1x128xf32>
    %231 = tpu.concatenate %229, %230 in 0 : vector<15x128xf32>, vector<1x128xf32> -> vector<16x128xf32>
    %232 = vector.extract_strided_slice %225 {offsets = [0, 127], sizes = [16, 1], strides = [1, 1]} : vector<16x128xf32> to vector<16x1xf32>
    %233 = vector.extract_strided_slice %225 {offsets = [0, 0], sizes = [16, 127], strides = [1, 1]} : vector<16x128xf32> to vector<16x127xf32>
    %234 = tpu.concatenate %232, %233 in 1 : vector<16x1xf32>, vector<16x127xf32> -> vector<16x128xf32>
    %235 = vector.extract_strided_slice %225 {offsets = [0, 1], sizes = [16, 127], strides = [1, 1]} : vector<16x128xf32> to vector<16x127xf32>
    %236 = vector.extract_strided_slice %225 {offsets = [0, 0], sizes = [16, 1], strides = [1, 1]} : vector<16x128xf32> to vector<16x1xf32>
    %237 = tpu.concatenate %235, %236 in 1 : vector<16x127xf32>, vector<16x1xf32> -> vector<16x128xf32>
    %238 = vector.shape_cast %39 : vector<16x1xi1> to vector<16x1xi1>
    %239 = vector.broadcast %238 : vector<16x1xi1> to vector<16x128xi1>
    %240 = arith.select %239, %231, %228 : vector<16x128xi1>, vector<16x128xf32>
    %241 = vector.shape_cast %41 : vector<16x1xi1> to vector<16x1xi1>
    %242 = vector.broadcast %241 : vector<16x1xi1> to vector<16x128xi1>
    %243 = arith.select %242, %228, %231 : vector<16x128xi1>, vector<16x128xf32>
    %244 = arith.addf %240, %243 : vector<16x128xf32>
    %245 = vector.shape_cast %43 : vector<1x128xi1> to vector<1x128xi1>
    %246 = vector.broadcast %245 : vector<1x128xi1> to vector<16x128xi1>
    %247 = arith.select %246, %237, %234 : vector<16x128xi1>, vector<16x128xf32>
    %248 = vector.shape_cast %45 : vector<1x128xi1> to vector<1x128xi1>
    %249 = vector.broadcast %248 : vector<1x128xi1> to vector<16x128xi1>
    %250 = arith.select %249, %234, %237 : vector<16x128xi1>, vector<16x128xf32>
    %251 = arith.addf %247, %250 : vector<16x128xf32>
    %252 = arith.addf %244, %251 : vector<16x128xf32>
    %cst_23 = arith.constant 2.500000e-01 : f32
    %253 = vector.broadcast %cst_23 : f32 to vector<16x128xf32>
    %254 = arith.mulf %253, %252 : vector<16x128xf32>
    %255 = arith.addf %254, %2 : vector<16x128xf32>
    %c7_i32 = arith.constant 7 : i32
    %256 = vector.extract_strided_slice %255 {offsets = [15, 0], sizes = [1, 128], strides = [1, 1]} : vector<16x128xf32> to vector<1x128xf32>
    %257 = vector.extract_strided_slice %255 {offsets = [0, 0], sizes = [15, 128], strides = [1, 1]} : vector<16x128xf32> to vector<15x128xf32>
    %258 = tpu.concatenate %256, %257 in 0 : vector<1x128xf32>, vector<15x128xf32> -> vector<16x128xf32>
    %259 = vector.extract_strided_slice %255 {offsets = [1, 0], sizes = [15, 128], strides = [1, 1]} : vector<16x128xf32> to vector<15x128xf32>
    %260 = vector.extract_strided_slice %255 {offsets = [0, 0], sizes = [1, 128], strides = [1, 1]} : vector<16x128xf32> to vector<1x128xf32>
    %261 = tpu.concatenate %259, %260 in 0 : vector<15x128xf32>, vector<1x128xf32> -> vector<16x128xf32>
    %262 = vector.extract_strided_slice %255 {offsets = [0, 127], sizes = [16, 1], strides = [1, 1]} : vector<16x128xf32> to vector<16x1xf32>
    %263 = vector.extract_strided_slice %255 {offsets = [0, 0], sizes = [16, 127], strides = [1, 1]} : vector<16x128xf32> to vector<16x127xf32>
    %264 = tpu.concatenate %262, %263 in 1 : vector<16x1xf32>, vector<16x127xf32> -> vector<16x128xf32>
    %265 = vector.extract_strided_slice %255 {offsets = [0, 1], sizes = [16, 127], strides = [1, 1]} : vector<16x128xf32> to vector<16x127xf32>
    %266 = vector.extract_strided_slice %255 {offsets = [0, 0], sizes = [16, 1], strides = [1, 1]} : vector<16x128xf32> to vector<16x1xf32>
    %267 = tpu.concatenate %265, %266 in 1 : vector<16x127xf32>, vector<16x1xf32> -> vector<16x128xf32>
    %268 = vector.shape_cast %39 : vector<16x1xi1> to vector<16x1xi1>
    %269 = vector.broadcast %268 : vector<16x1xi1> to vector<16x128xi1>
    %270 = arith.select %269, %261, %258 : vector<16x128xi1>, vector<16x128xf32>
    %271 = vector.shape_cast %41 : vector<16x1xi1> to vector<16x1xi1>
    %272 = vector.broadcast %271 : vector<16x1xi1> to vector<16x128xi1>
    %273 = arith.select %272, %258, %261 : vector<16x128xi1>, vector<16x128xf32>
    %274 = arith.addf %270, %273 : vector<16x128xf32>
    %275 = vector.shape_cast %43 : vector<1x128xi1> to vector<1x128xi1>
    %276 = vector.broadcast %275 : vector<1x128xi1> to vector<16x128xi1>
    %277 = arith.select %276, %267, %264 : vector<16x128xi1>, vector<16x128xf32>
    %278 = vector.shape_cast %45 : vector<1x128xi1> to vector<1x128xi1>
    %279 = vector.broadcast %278 : vector<1x128xi1> to vector<16x128xi1>
    %280 = arith.select %279, %264, %267 : vector<16x128xi1>, vector<16x128xf32>
    %281 = arith.addf %277, %280 : vector<16x128xf32>
    %282 = arith.addf %274, %281 : vector<16x128xf32>
    %cst_24 = arith.constant 2.500000e-01 : f32
    %283 = vector.broadcast %cst_24 : f32 to vector<16x128xf32>
    %284 = arith.mulf %283, %282 : vector<16x128xf32>
    %285 = arith.addf %284, %2 : vector<16x128xf32>
    %c0_25 = arith.constant 0 : index
    %c0_26 = arith.constant 0 : index
    %286 = vector.load %arg3[%c0_25, %c0_26] : memref<16x128xf32, #tpu.memory_space<vmem>>, vector<16x128xf32>
    tpu.vector_store %arg3[%c0_25, %c0_26], %285 {strides = array<i32>} : memref<16x128xf32, #tpu.memory_space<vmem>>, vector<16x128xf32>,
    return
  }
  func.func @transform_0(%arg0: i32) -> (i32, i32) {
    %c0_i32 = arith.constant 0 : i32
    %c0_i32_0 = arith.constant 0 : i32
    return %arg0, %c0_i32 : i32, i32
  }
  func.func @transform_1(%arg0: i32) -> (i32, i32) {
    %c0_i32 = arith.constant 0 : i32
    %c0_i32_0 = arith.constant 0 : i32
    return %arg0, %c0_i32 : i32, i32
  }
  func.func @transform_2(%arg0: i32) -> (i32, i32) {
    %c0_i32 = arith.constant 0 : i32
    %c0_i32_0 = arith.constant 0 : i32
    return %arg0, %c0_i32 : i32, i32
  }
}

</mosaic_0001>

<llo_original>
// kernel: tpu_custom_call.1
$region0: #{tpu_custom_call.1}
  #allocation0 [shape = 'u32[]', space=smem, size = 0x4, offset = 0x4, fixed_abs, tag = 'smem constant byte address 0x4 - core index']
  #allocation1 [shape = 'u32[144,128]{1,0:T(1,128)}', space=vmem, size = 0x12000, scoped, tag = 'internal scratch']
  %s0 = inlined_call_operand.hbm [shape: f32[16,128], index: 0, kind: input, shape index: {}]
  %s1 = inlined_call_operand.hbm [shape: f32[16,128], index: 1, kind: output, shape index: {0}]
  %s2 = inlined_call_operand.hbm [shape: f32[16,128], index: 2, kind: output, shape index: {1}]
  %s3 = inlined_call_operand.hbm [shape: f32[16,128], index: 3, kind: output, shape index: {2}]
  %s4 = inlined_call_operand.hbm [shape: f32[16,128], index: 4, kind: output, shape index: {3}]
  %5 = xla_tuple %s1, %s2, %s3, %s4
  %s6 = sld [smem:[#allocation0]]
  $region42: #{tpu_custom_call.1} parent=0
    _
  %s8 = ssub.s32 1, %s6
  %s9 = scalar_select 0, %s8, %s6
  $region1: #{tpu_custom_call.1} parent=0
    #allocation2 [shape = 'u8[8192]{0}', space=vmem, size = 0x2000, scoped, tag = 'input window, operand 0, single buffered']
    #allocation3 [shape = 's32[1]{0}', space=sflag, size = 0x4, scoped, tag = 'scoped memory for tpu_custom_call.1']
    #allocation4 [shape = 's32[1]{0}', space=sflag, size = 0x4, scoped, tag = 'scoped memory for tpu_custom_call.1']
    #allocation5 [shape = 'u8[8192]{0}', space=vmem, size = 0x2000, scoped, tag = 'output window, operand 0, single buffered']
    #allocation6 [shape = 'u8[8192]{0}', space=vmem, size = 0x2000, scoped, tag = 'output window, operand 1, single buffered']
    #allocation7 [shape = 's32[1]{0}', space=sflag, size = 0x4, scoped, tag = 'scoped memory for tpu_custom_call.1']
    #allocation8 [shape = 'u8[8192]{0}', space=vmem, size = 0x2000, scoped, tag = 'output window, operand 2, single buffered']
    #allocation9 [shape = 'u8[8192]{0}', space=vmem, size = 0x2000, scoped, tag = 'output window, operand 3, single buffered']
    #allocation10 [shape = 's32[1]{0}', space=sflag, size = 0x4, scoped, tag = 'scoped memory for tpu_custom_call.1']
    %10 = vsyncpa [#allocation3], 0
    %11 = vsyncpa [#allocation4], 0
    %12 = vsyncpa [#allocation7], 0
    %13 = vsyncpa [#allocation10], 0
    // Predicated region
    $region2: #{tpu_custom_call.1} parent=1 // pred_check
      _
    $region3: #{tpu_custom_call.1} parent=1 // pred_check_branch
      %15 = sbr.rel (0) target = $region5
    $region4: #{tpu_custom_call.1} parent=1 // pred_region
      %s17 = ssub.s32 256, 256
      %18 = vsyncadd [#allocation3], %s17
      %s19 = sshll.u32 [#allocation2], 4
      %s20 = int_to_ptr.vmem [resolvable:$true] %s19
      %25 = dma.hbm_to_vmem [thread:$0]  %s0, 256, %s20, [#allocation3], 128, 128, 8
    $region5: #{tpu_custom_call.1} parent=1 // pred_fallthru
      _
    // Predicated region
    $region6: #{tpu_custom_call.1} parent=1 // pred_check
      _
    $region7: #{tpu_custom_call.1} parent=1 // pred_check_branch
      %27 = sbr.rel (0) target = $region9
    $region8: #{tpu_custom_call.1} parent=1 // pred_region
      %28 = dma.done [#allocation3], 256
    $region9: #{tpu_custom_call.1} parent=1 // pred_fallthru
      _
    %v29 = vld [vmem:[#allocation2] sm:$0xff]
    %v30 = vld [vmem:[#allocation2 + $0x8] sm:$0xff]
    %v31 = vrot.slane %v29, 7
    %v32 = vrot.slane %v30, 7
    %v33 = vlaneseq
    %v34 = vshrl.u32 %v33, 7
    %vm35 = vcmp.lt.s32.totalorder %v34, 1
    %v36 = vsel %vm35, %v31, %v32
    %v37 = vsel %vm35, %v32, %v31
    %38 = vst [vmem:[#allocation5] sm:$0xff] %v37
    %39 = vst [vmem:[#allocation5 + $0x8] sm:$0xff] %v36
    %40 = vrot.lane.b32.xlu0 %v29, 1
    %v41 = vpop.permute.xlu0 %40
    %42 = vrot.lane.b32.xlu0 %v30, 1
    %v43 = vpop.permute.xlu0 %42
    %44 = vst [vmem:[#allocation6] sm:$0xff] %v41
    %45 = vst [vmem:[#allocation6 + $0x8] sm:$0xff] %v43
    %v46 = vrot.slane %v29, 1
    %v47 = vrot.slane %v30, 1
    %vm48 = vcmp.lt.s32.totalorder %v34, 7
    %v49 = vsel %vm48, %v46, %v47
    %v50 = vsel %vm48, %v47, %v46
    %51 = vst [vmem:[#allocation8] sm:$0xff] %v49
    %52 = vst [vmem:[#allocation8 + $0x8] sm:$0xff] %v50
    %53 = vrot.lane.b32.xlu0 %v29, 127
    %v54 = vpop.permute.xlu0 %53
    %55 = vrot.lane.b32.xlu0 %v30, 127
    %v56 = vpop.permute.xlu0 %55
    %57 = vst [vmem:[#allocation9] sm:$0xff] %v54
    %58 = vst [vmem:[#allocation9 + $0x8] sm:$0xff] %v56
    // Predicated region
    $region10: #{tpu_custom_call.1} parent=1 // pred_check
      _
    $region11: #{tpu_custom_call.1} parent=1 // pred_check_branch
      %60 = sbr.rel (0) target = $region13
    $region12: #{tpu_custom_call.1} parent=1 // pred_region
      %s62 = ssub.s32 256, 256
      %63 = vsyncadd [#allocation4], %s62
      %s64 = sshll.u32 [#allocation5], 4
      %s65 = int_to_ptr.vmem [resolvable:$true] %s64
      %70 = dma.vmem_to_hbm [thread:$0]  %s65, 256, %s1, [#allocation4], 128, 128, 8
    $region13: #{tpu_custom_call.1} parent=1 // pred_fallthru
      _
    // Predicated region
    $region14: #{tpu_custom_call.1} parent=1 // pred_check
      _
    $region15: #{tpu_custom_call.1} parent=1 // pred_check_branch
      %72 = sbr.rel (0) target = $region17
    $region16: #{tpu_custom_call.1} parent=1 // pred_region
      %s74 = ssub.s32 256, 256
      %75 = vsyncadd [#allocation7], %s74
      %s76 = sshll.u32 [#allocation6], 4
      %s77 = int_to_ptr.vmem [resolvable:$true] %s76
      %82 = dma.vmem_to_hbm [thread:$0]  %s77, 256, %s2, [#allocation7], 128, 128, 8
    $region17: #{tpu_custom_call.1} parent=1 // pred_fallthru
      _
    // Predicated region
    $region18: #{tpu_custom_call.1} parent=1 // pred_check
      _
    $region19: #{tpu_custom_call.1} parent=1 // pred_check_branch
      %84 = sbr.rel (0) target = $region21
    $region20: #{tpu_custom_call.1} parent=1 // pred_region
      %s86 = ssub.s32 256, 256
      %87 = vsyncadd [#allocation7], %s86
      %s88 = sshll.u32 [#allocation8], 4
      %s89 = int_to_ptr.vmem [resolvable:$true] %s88
      %94 = dma.vmem_to_hbm [thread:$0]  %s89, 256, %s3, [#allocation7], 128, 128, 8
    $region21: #{tpu_custom_call.1} parent=1 // pred_fallthru
      _
    // Predicated region
    $region22: #{tpu_custom_call.1} parent=1 // pred_check
      _
    $region23: #{tpu_custom_call.1} parent=1 // pred_check_branch
      %96 = sbr.rel (0) target = $region25
    $region24: #{tpu_custom_call.1} parent=1 // pred_region
      %s98 = ssub.s32 256, 256
      %99 = vsyncadd [#allocation10], %s98
      %s100 = sshll.u32 [#allocation9], 4
      %s101 = int_to_ptr.vmem [resolvable:$true] %s100
      %106 = dma.vmem_to_hbm [thread:$0]  %s101, 256, %s4, [#allocation10], 128, 128, 8
    $region25: #{tpu_custom_call.1} parent=1 // pred_fallthru
      _
    // Predicated region
    $region26: #{tpu_custom_call.1} parent=1 // pred_check
      _
    $region27: #{tpu_custom_call.1} parent=1 // pred_check_branch
      %108 = sbr.rel (0) target = $region29
    $region28: #{tpu_custom_call.1} parent=1 // pred_region
      %109 = dma.done [#allocation4], 256
    $region29: #{tpu_custom_call.1} parent=1 // pred_fallthru
      _
    // Predicated region
    $region30: #{tpu_custom_call.1} parent=1 // pred_check
      _
    $region31: #{tpu_custom_call.1} parent=1 // pred_check_branch
      %111 = sbr.rel (0) target = $region33
    $region32: #{tpu_custom_call.1} parent=1 // pred_region
      %112 = dma.done [#allocation7], 256
    $region33: #{tpu_custom_call.1} parent=1 // pred_fallthru
      _
    // Predicated region
    $region34: #{tpu_custom_call.1} parent=1 // pred_check
      _
    $region35: #{tpu_custom_call.1} parent=1 // pred_check_branch
      %114 = sbr.rel (0) target = $region37
    $region36: #{tpu_custom_call.1} parent=1 // pred_region
      %115 = dma.done [#allocation7], 256
    $region37: #{tpu_custom_call.1} parent=1 // pred_fallthru
      _
    // Predicated region
    $region38: #{tpu_custom_call.1} parent=1 // pred_check
      _
    $region39: #{tpu_custom_call.1} parent=1 // pred_check_branch
      %117 = sbr.rel (0) target = $region41
    $region40: #{tpu_custom_call.1} parent=1 // pred_region
      %118 = dma.done [#allocation10], 256
    $region41: #{tpu_custom_call.1} parent=1 // pred_fallthru
      _
    %119 = vsyncpa [#allocation3], 1
    %120 = vsyncpa [#allocation4], 1
    %121 = vsyncpa [#allocation7], 1
    %122 = vsyncpa [#allocation10], 1

// kernel: tpu_custom_call.1
$region0: #{tpu_custom_call.1}
  #allocation0 [shape = 'u32[]', space=smem, size = 0x4, offset = 0x4, fixed_abs, tag = 'smem constant byte address 0x4 - core index']
  #allocation1 [shape = 'u32[144,128]{1,0:T(1,128)}', space=vmem, size = 0x12000, scoped, tag = 'internal scratch']
  %s0 = inlined_call_operand.hbm [shape: f32[16,128], index: 0, kind: input, shape index: {}]
  %s1 = inlined_call_operand.hbm [shape: f32[16,128], index: 1, kind: input, shape index: {}]
  %s2 = inlined_call_operand.hbm [shape: f32[16,128], index: 2, kind: output, shape index: {}]
  %s3 = sld [smem:[#allocation0]]
  $region26: #{tpu_custom_call.1} parent=0
    _
  %s5 = ssub.s32 1, %s3
  %s6 = scalar_select 0, %s5, %s3
  $region1: #{tpu_custom_call.1} parent=0
    #allocation2 [shape = 'u8[8192]{0}', space=vmem, size = 0x2000, scoped, tag = 'input window, operand 0, single buffered']
    #allocation3 [shape = 's32[1]{0}', space=sflag, size = 0x4, scoped, tag = 'scoped memory for tpu_custom_call.1']
    #allocation4 [shape = 's32[1]{0}', space=sflag, size = 0x4, scoped, tag = 'scoped memory for tpu_custom_call.1']
    #allocation5 [shape = 'u8[8192]{0}', space=vmem, size = 0x2000, scoped, tag = 'input window, operand 1, single buffered']
    #allocation6 [shape = 's32[1]{0}', space=sflag, size = 0x4, scoped, tag = 'scoped memory for tpu_custom_call.1']
    #allocation7 [shape = 'u8[8192]{0}', space=vmem, size = 0x2000, scoped, tag = 'output window, operand 0, single buffered']
    %7 = vsyncpa [#allocation3], 0
    %8 = vsyncpa [#allocation6], 0
    %9 = vsyncpa [#allocation4], 0
    // Predicated region
    $region2: #{tpu_custom_call.1} parent=1 // pred_check
      _
    $region3: #{tpu_custom_call.1} parent=1 // pred_check_branch
      %11 = sbr.rel (0) target = $region5
    $region4: #{tpu_custom_call.1} parent=1 // pred_region
      %s13 = ssub.s32 256, 256
      %14 = vsyncadd [#allocation3], %s13
      %s15 = sshll.u32 [#allocation2], 4
      %s16 = int_to_ptr.vmem [resolvable:$true] %s15
      %21 = dma.hbm_to_vmem [thread:$0]  %s0, 256, %s16, [#allocation3], 128, 128, 8
    $region5: #{tpu_custom_call.1} parent=1 // pred_fallthru
      _
    // Predicated region
    $region6: #{tpu_custom_call.1} parent=1 // pred_check
      _
    $region7: #{tpu_custom_call.1} parent=1 // pred_check_branch
      %23 = sbr.rel (0) target = $region9
    $region8: #{tpu_custom_call.1} parent=1 // pred_region
      %s25 = ssub.s32 256, 256
      %26 = vsyncadd [#allocation6], %s25
      %s27 = sshll.u32 [#allocation5], 4
      %s28 = int_to_ptr.vmem [resolvable:$true] %s27
      %33 = dma.hbm_to_vmem [thread:$0]  %s1, 256, %s28, [#allocation6], 128, 128, 8
    $region9: #{tpu_custom_call.1} parent=1 // pred_fallthru
      _
    // Predicated region
    $region10: #{tpu_custom_call.1} parent=1 // pred_check
      _
    $region11: #{tpu_custom_call.1} parent=1 // pred_check_branch
      %35 = sbr.rel (0) target = $region13
    $region12: #{tpu_custom_call.1} parent=1 // pred_region
      %36 = dma.done [#allocation3], 256
    $region13: #{tpu_custom_call.1} parent=1 // pred_fallthru
      _
    // Predicated region
    $region14: #{tpu_custom_call.1} parent=1 // pred_check
      _
    $region15: #{tpu_custom_call.1} parent=1 // pred_check_branch
      %38 = sbr.rel (0) target = $region17
    $region16: #{tpu_custom_call.1} parent=1 // pred_region
      %39 = dma.done [#allocation6], 256
    $region17: #{tpu_custom_call.1} parent=1 // pred_fallthru
      _
    %v40 = vld [vmem:[#allocation2] sm:$0xff]
    %v41 = vld [vmem:[#allocation2 + $0x8] sm:$0xff]
    %v42 = vmul.f32 %v40, 1.1111111e-05
    %v43 = vmul.f32 %v41, 1.1111111e-05
    %v44 = vld [vmem:[#allocation5] sm:$0xff]
    %v45 = vld [vmem:[#allocation5 + $0x8] sm:$0xff]
    %v46 = vlaneseq
    %v47 = vshrl.u32 %v46, 7
    %v48 = vadd.s32 %v47, 8
    %vm49 = vcmp.lt.s32.totalorder %v47, 0
    %v50 = vsub.s32 0, %v47
    %v51 = vsel %vm49, %v50, %v47
    %v52 = vshrl.u32 %v51, 4
    %v53 = vand.u32 %v51, 15
    %v54 = vsub.s32 0, %v53
    %v55 = vsel %vm49, %v54, %v53
    %vm56 = vcmp.lt.s32.totalorder %v48, 0
    %v57 = vsub.s32 0, %v48
    %v58 = vsel %vm56, %v57, %v48
    %v59 = vshrl.u32 %v58, 4
    %v60 = vand.u32 %v58, 15
    %v61 = vsub.s32 0, %v60
    %v62 = vsel %vm56, %v61, %v60
    %vm63 = vcmp.ne.s32.totalorder %v55, 0
    %vm64 = vcmp.ne.s32.totalorder %v62, 0
    %vm65 = vcmp.lt.s32.totalorder %v55, 0
    %vm66 = vcmp.lt.s32.totalorder %v62, 0
    %vm67 = vmand %vm65, %vm63
    %vm68 = vmand %vm66, %vm64
    %v69 = vadd.s32 %v55, 16
    %v70 = vadd.s32 %v62, 16
    %v71 = vsel %vm67, %v69, %v55
    %v72 = vsel %vm68, %v70, %v62
    %v73 = vlaneseq
    %v74 = vand.u32 %v73, 127
    %vm75 = vcmp.lt.s32.totalorder %v74, 0
    %v76 = vsub.s32 0, %v74
    %v77 = vsel %vm75, %v76, %v74
    %v78 = vshrl.u32 %v77, 4
    %v79 = vand.u32 %v77, 15
    %v80 = vsub.s32 0, %v79
    %v81 = vsel %vm75, %v80, %v79
    %vm82 = vcmp.ne.s32.totalorder %v81, 0
    %vm83 = vcmp.lt.s32.totalorder %v81, 0
    %vm84 = vmand %vm83, %vm82
    %v85 = vadd.s32 %v81, 16
    %v86 = vsel %vm84, %v85, %v81
    %vm87 = vcmp.eq.s32.totalorder %v71, 0
    %vm88 = vcmp.eq.s32.totalorder %v72, 0
    %vm89 = vcmp.eq.s32.totalorder %v71, 15
    %vm90 = vcmp.eq.s32.totalorder %v72, 15
    %vm91 = vcmp.eq.s32.totalorder %v86, 0
    %vm92 = vcmp.eq.s32.totalorder %v86, 15
    %v94 = vrot.slane %v45, 7
    %vm97 = vcmask 1040384
    %v98 = vrot.slane %v44, 7
    %v99 = vsel %vm97, %v98, %v94
    %v102 = vsel %vm97, %v94, %v98
    %vm103 = vcmask 1046528
    %v104 = vrot.slane %v44, 1
    %v105 = vrot.slane %v45, 1
    %v106 = vsel %vm103, %v104, %v105
    %v110 = vsel %vm103, %v105, %v104
    %111 = vrot.lane.b32.xlu0 %v44, 1
    %v112 = vpop.permute.xlu0 %111
    %113 = vrot.lane.b32.xlu0 %v45, 1
    %v114 = vpop.permute.xlu0 %113
    %117 = vrot.lane.b32.xlu0 %v44, 127
    %v118 = vpop.permute.xlu0 %117
    %119 = vrot.lane.b32.xlu0 %v45, 127
    %v120 = vpop.permute.xlu0 %119
    %v123 = vsel %vm87, 1, 0
    %v124 = vsel %vm88, 1, 0
    %vm125 = vcmp.eq.s32.totalorder %v123, 1
    %vm126 = vcmp.eq.s32.totalorder %v124, 1
    %v127 = vsel %vm125, %v106, %v102
    %v128 = vsel %vm126, %v110, %v99
    %v129 = vsel %vm89, 1, 0
    %v130 = vsel %vm90, 1, 0
    %vm131 = vcmp.eq.s32.totalorder %v129, 1
    %vm132 = vcmp.eq.s32.totalorder %v130, 1
    %v133 = vsel %vm131, %v102, %v106
    %v134 = vsel %vm132, %v99, %v110
    %v135 = vadd.f32 %v127, %v133
    %v136 = vadd.f32 %v128, %v134
    %v137 = vsel %vm91, 1, 0
    %vm138 = vcmp.eq.s32.totalorder %v137, 1
    %v139 = vsel %vm138, %v118, %v112
    %v140 = vsel %vm138, %v120, %v114
    %v141 = vsel %vm92, 1, 0
    %vm142 = vcmp.eq.s32.totalorder %v141, 1
    %v143 = vsel %vm142, %v112, %v118
    %v144 = vsel %vm142, %v114, %v120
    %v145 = vadd.f32 %v139, %v143
    %v146 = vadd.f32 %v140, %v144
    %v147 = vadd.f32 %v135, %v145
    %v148 = vadd.f32 %v136, %v146
    %v149 = vmul.f32 %v147, 0.25
    %v150 = vmul.f32 %v148, 0.25
    %v151 = vadd.f32 %v149, %v42
    %v152 = vadd.f32 %v150, %v43
    %v154 = vrot.slane %v152, 7
    %v157 = vrot.slane %v151, 7
    %v158 = vsel %vm97, %v157, %v154
    %v161 = vsel %vm97, %v154, %v157
    %v162 = vrot.slane %v151, 1
    %v163 = vrot.slane %v152, 1
    %v164 = vsel %vm103, %v162, %v163
    %v168 = vsel %vm103, %v163, %v162
    %169 = vrot.lane.b32.xlu0 %v151, 1
    %v170 = vpop.permute.xlu0 %169
    %171 = vrot.lane.b32.xlu0 %v152, 1
    %v172 = vpop.permute.xlu0 %171
    %175 = vrot.lane.b32.xlu0 %v151, 127
    %v176 = vpop.permute.xlu0 %175
    %177 = vrot.lane.b32.xlu0 %v152, 127
    %v178 = vpop.permute.xlu0 %177
    %v181 = vsel %vm125, %v164, %v161
    %v182 = vsel %vm126, %v168, %v158
    %v183 = vsel %vm131, %v161, %v164
    %v184 = vsel %vm132, %v158, %v168
    %v185 = vadd.f32 %v181, %v183
    %v186 = vadd.f32 %v182, %v184
    %v187 = vsel %vm138, %v176, %v170
    %v188 = vsel %vm138, %v178, %v172
    %v189 = vsel %vm142, %v170, %v176
    %v190 = vsel %vm142, %v172, %v178
    %v191 = vadd.f32 %v187, %v189
    %v192 = vadd.f32 %v188, %v190
    %v193 = vadd.f32 %v185, %v191
    %v194 = vadd.f32 %v186, %v192
    %v195 = vmul.f32 %v193, 0.25
    %v196 = vmul.f32 %v194, 0.25
    %v197 = vadd.f32 %v195, %v42
    %v198 = vadd.f32 %v196, %v43
    %v200 = vrot.slane %v198, 7
    %v203 = vrot.slane %v197, 7
    %v204 = vsel %vm97, %v203, %v200
    %v207 = vsel %vm97, %v200, %v203
    %v208 = vrot.slane %v197, 1
    %v209 = vrot.slane %v198, 1
    %v210 = vsel %vm103, %v208, %v209
    %v214 = vsel %vm103, %v209, %v208
    %215 = vrot.lane.b32.xlu0 %v197, 1
    %v216 = vpop.permute.xlu0 %215
    %217 = vrot.lane.b32.xlu0 %v198, 1
    %v218 = vpop.permute.xlu0 %217
    %221 = vrot.lane.b32.xlu0 %v197, 127
    %v222 = vpop.permute.xlu0 %221
    %223 = vrot.lane.b32.xlu0 %v198, 127
    %v224 = vpop.permute.xlu0 %223
    %v227 = vsel %vm125, %v210, %v207
    %v228 = vsel %vm126, %v214, %v204
    %v229 = vsel %vm131, %v207, %v210
    %v230 = vsel %vm132, %v204, %v214
    %v231 = vadd.f32 %v227, %v229
    %v232 = vadd.f32 %v228, %v230
    %v233 = vsel %vm138, %v222, %v216
    %v234 = vsel %vm138, %v224, %v218
    %v235 = vsel %vm142, %v216, %v222
    %v236 = vsel %vm142, %v218, %v224
    %v237 = vadd.f32 %v233, %v235
    %v238 = vadd.f32 %v234, %v236
    %v239 = vadd.f32 %v231, %v237
    %v240 = vadd.f32 %v232, %v238
    %v241 = vmul.f32 %v239, 0.25
    %v242 = vmul.f32 %v240, 0.25
    %v243 = vadd.f32 %v241, %v42
    %v244 = vadd.f32 %v242, %v43
    %v246 = vrot.slane %v244, 7
    %v249 = vrot.slane %v243, 7
    %v250 = vsel %vm97, %v249, %v246
    %v253 = vsel %vm97, %v246, %v249
    %v254 = vrot.slane %v243, 1
    %v255 = vrot.slane %v244, 1
    %v256 = vsel %vm103, %v254, %v255
    %v260 = vsel %vm103, %v255, %v254
    %261 = vrot.lane.b32.xlu0 %v243, 1
    %v262 = vpop.permute.xlu0 %261
    %263 = vrot.lane.b32.xlu0 %v244, 1
    %v264 = vpop.permute.xlu0 %263
    %267 = vrot.lane.b32.xlu0 %v243, 127
    %v268 = vpop.permute.xlu0 %267
    %269 = vrot.lane.b32.xlu0 %v244, 127
    %v270 = vpop.permute.xlu0 %269
    %v273 = vsel %vm125, %v256, %v253
    %v274 = vsel %vm126, %v260, %v250
    %v275 = vsel %vm131, %v253, %v256
    %v276 = vsel %vm132, %v250, %v260
    %v277 = vadd.f32 %v273, %v275
    %v278 = vadd.f32 %v274, %v276
    %v279 = vsel %vm138, %v268, %v262
    %v280 = vsel %vm138, %v270, %v264
    %v281 = vsel %vm142, %v262, %v268
    %v282 = vsel %vm142, %v264, %v270
    %v283 = vadd.f32 %v279, %v281
    %v284 = vadd.f32 %v280, %v282
    %v285 = vadd.f32 %v277, %v283
    %v286 = vadd.f32 %v278, %v284
    %v287 = vmul.f32 %v285, 0.25
    %v288 = vmul.f32 %v286, 0.25
    %v289 = vadd.f32 %v287, %v42
    %v290 = vadd.f32 %v288, %v43
    %v292 = vrot.slane %v290, 7
    %v295 = vrot.slane %v289, 7
    %v296 = vsel %vm97, %v295, %v292
    %v299 = vsel %vm97, %v292, %v295
    %v300 = vrot.slane %v289, 1
    %v301 = vrot.slane %v290, 1
    %v302 = vsel %vm103, %v300, %v301
    %v306 = vsel %vm103, %v301, %v300
    %307 = vrot.lane.b32.xlu0 %v289, 1
    %v308 = vpop.permute.xlu0 %307
    %309 = vrot.lane.b32.xlu0 %v290, 1
    %v310 = vpop.permute.xlu0 %309
    %313 = vrot.lane.b32.xlu0 %v289, 127
    %v314 = vpop.permute.xlu0 %313
    %315 = vrot.lane.b32.xlu0 %v290, 127
    %v316 = vpop.permute.xlu0 %315
    %v319 = vsel %vm125, %v302, %v299
    %v320 = vsel %vm126, %v306, %v296
    %v321 = vsel %vm131, %v299, %v302
    %v322 = vsel %vm132, %v296, %v306
    %v323 = vadd.f32 %v319, %v321
    %v324 = vadd.f32 %v320, %v322
    %v325 = vsel %vm138, %v314, %v308
    %v326 = vsel %vm138, %v316, %v310
    %v327 = vsel %vm142, %v308, %v314
    %v328 = vsel %vm142, %v310, %v316
    %v329 = vadd.f32 %v325, %v327
    %v330 = vadd.f32 %v326, %v328
    %v331 = vadd.f32 %v323, %v329
    %v332 = vadd.f32 %v324, %v330
    %v333 = vmul.f32 %v331, 0.25
    %v334 = vmul.f32 %v332, 0.25
    %v335 = vadd.f32 %v333, %v42
    %v336 = vadd.f32 %v334, %v43
    %v338 = vrot.slane %v336, 7
    %v341 = vrot.slane %v335, 7
    %v342 = vsel %vm97, %v341, %v338
    %v345 = vsel %vm97, %v338, %v341
    %v346 = vrot.slane %v335, 1
    %v347 = vrot.slane %v336, 1
    %v348 = vsel %vm103, %v346, %v347
    %v352 = vsel %vm103, %v347, %v346
    %353 = vrot.lane.b32.xlu0 %v335, 1
    %v354 = vpop.permute.xlu0 %353
    %355 = vrot.lane.b32.xlu0 %v336, 1
    %v356 = vpop.permute.xlu0 %355
    %359 = vrot.lane.b32.xlu0 %v335, 127
    %v360 = vpop.permute.xlu0 %359
    %361 = vrot.lane.b32.xlu0 %v336, 127
    %v362 = vpop.permute.xlu0 %361
    %v365 = vsel %vm125, %v348, %v345
    %v366 = vsel %vm126, %v352, %v342
    %v367 = vsel %vm131, %v345, %v348
    %v368 = vsel %vm132, %v342, %v352
    %v369 = vadd.f32 %v365, %v367
    %v370 = vadd.f32 %v366, %v368
    %v371 = vsel %vm138, %v360, %v354
    %v372 = vsel %vm138, %v362, %v356
    %v373 = vsel %vm142, %v354, %v360
    %v374 = vsel %vm142, %v356, %v362
    %v375 = vadd.f32 %v371, %v373
    %v376 = vadd.f32 %v372, %v374
    %v377 = vadd.f32 %v369, %v375
    %v378 = vadd.f32 %v370, %v376
    %v379 = vmul.f32 %v377, 0.25
    %v380 = vmul.f32 %v378, 0.25
    %v381 = vadd.f32 %v379, %v42
    %v382 = vadd.f32 %v380, %v43
    %v384 = vrot.slane %v382, 7
    %v387 = vrot.slane %v381, 7
    %v388 = vsel %vm97, %v387, %v384
    %v391 = vsel %vm97, %v384, %v387
    %v392 = vrot.slane %v381, 1
    %v393 = vrot.slane %v382, 1
    %v394 = vsel %vm103, %v392, %v393
    %v398 = vsel %vm103, %v393, %v392
    %399 = vrot.lane.b32.xlu0 %v381, 1
    %v400 = vpop.permute.xlu0 %399
    %401 = vrot.lane.b32.xlu0 %v382, 1
    %v402 = vpop.permute.xlu0 %401
    %405 = vrot.lane.b32.xlu0 %v381, 127
    %v406 = vpop.permute.xlu0 %405
    %407 = vrot.lane.b32.xlu0 %v382, 127
    %v408 = vpop.permute.xlu0 %407
    %v411 = vsel %vm125, %v394, %v391
    %v412 = vsel %vm126, %v398, %v388
    %v413 = vsel %vm131, %v391, %v394
    %v414 = vsel %vm132, %v388, %v398
    %v415 = vadd.f32 %v411, %v413
    %v416 = vadd.f32 %v412, %v414
    %v417 = vsel %vm138, %v406, %v400
    %v418 = vsel %vm138, %v408, %v402
    %v419 = vsel %vm142, %v400, %v406
    %v420 = vsel %vm142, %v402, %v408
    %v421 = vadd.f32 %v417, %v419
    %v422 = vadd.f32 %v418, %v420
    %v423 = vadd.f32 %v415, %v421
    %v424 = vadd.f32 %v416, %v422
    %v425 = vmul.f32 %v423, 0.25
    %v426 = vmul.f32 %v424, 0.25
    %v427 = vadd.f32 %v425, %v42
    %v428 = vadd.f32 %v426, %v43
    %v430 = vrot.slane %v428, 7
    %v433 = vrot.slane %v427, 7
    %v434 = vsel %vm97, %v433, %v430
    %v437 = vsel %vm97, %v430, %v433
    %v438 = vrot.slane %v427, 1
    %v439 = vrot.slane %v428, 1
    %v440 = vsel %vm103, %v438, %v439
    %v444 = vsel %vm103, %v439, %v438
    %445 = vrot.lane.b32.xlu0 %v427, 1
    %v446 = vpop.permute.xlu0 %445
    %447 = vrot.lane.b32.xlu0 %v428, 1
    %v448 = vpop.permute.xlu0 %447
    %451 = vrot.lane.b32.xlu0 %v427, 127
    %v452 = vpop.permute.xlu0 %451
    %453 = vrot.lane.b32.xlu0 %v428, 127
    %v454 = vpop.permute.xlu0 %453
    %v457 = vsel %vm125, %v440, %v437
    %v458 = vsel %vm126, %v444, %v434
    %v459 = vsel %vm131, %v437, %v440
    %v460 = vsel %vm132, %v434, %v444
    %v461 = vadd.f32 %v457, %v459
    %v462 = vadd.f32 %v458, %v460
    %v463 = vsel %vm138, %v452, %v446
    %v464 = vsel %vm138, %v454, %v448
    %v465 = vsel %vm142, %v446, %v452
    %v466 = vsel %vm142, %v448, %v454
    %v467 = vadd.f32 %v463, %v465
    %v468 = vadd.f32 %v464, %v466
    %v469 = vadd.f32 %v461, %v467
    %v470 = vadd.f32 %v462, %v468
    %v471 = vmul.f32 %v469, 0.25
    %v472 = vmul.f32 %v470, 0.25
    %v473 = vadd.f32 %v471, %v42
    %v474 = vadd.f32 %v472, %v43
    %475 = vst [vmem:[#allocation7] sm:$0xff] %v473
    %476 = vst [vmem:[#allocation7 + $0x8] sm:$0xff] %v474
    // Predicated region
    $region18: #{tpu_custom_call.1} parent=1 // pred_check
      _
    $region19: #{tpu_custom_call.1} parent=1 // pred_check_branch
      %478 = sbr.rel (0) target = $region21
    $region20: #{tpu_custom_call.1} parent=1 // pred_region
      %s480 = ssub.s32 256, 256
      %481 = vsyncadd [#allocation4], %s480
      %s482 = sshll.u32 [#allocation7], 4
      %s483 = int_to_ptr.vmem [resolvable:$true] %s482
      %488 = dma.vmem_to_hbm [thread:$0]  %s483, 256, %s2, [#allocation4], 128, 128, 8
    $region21: #{tpu_custom_call.1} parent=1 // pred_fallthru
      _
    // Predicated region
    $region22: #{tpu_custom_call.1} parent=1 // pred_check
      _
    $region23: #{tpu_custom_call.1} parent=1 // pred_check_branch
      %490 = sbr.rel (0) target = $region25
    $region24: #{tpu_custom_call.1} parent=1 // pred_region
      %491 = dma.done [#allocation4], 256
    $region25: #{tpu_custom_call.1} parent=1 // pred_fallthru
      _
    %492 = vsyncpa [#allocation3], 1
    %493 = vsyncpa [#allocation6], 1
    %494 = vsyncpa [#allocation4], 1

</llo_original>
